<compile_context>
chip_gen: v6e
topology: v6e:2x2x1
jax: 0.10.0
libtpu: 0.0.40
codegen_flags: <defaults>
</compile_context>

<pallas_src>
import functools

import jax
import jax.numpy as jnp
from jax.experimental import pallas as pl
from jax.experimental.pallas import tpu as pltpu


def _round_up(x: int, m: int) -> int:
    return ((x + m - 1) // m) * m


@functools.lru_cache(maxsize=1)
def _vmem_capacity_bytes() -> int:
    try:
        return int(pltpu.get_tpu_info().vmem_capacity_bytes)
    except Exception:
        return 64 * 1024 * 1024  # conservative (v7x per-TC capacity)


def _vmem_limit_bytes() -> int:
    cap = _vmem_capacity_bytes()
    # ~85% of capacity, and always leave >= 8 MiB for Mosaic internal scratch.
    return int(min(int(0.85 * cap), cap - 8 * 1024 * 1024))


def _fullk_footprint(tm, tn, kp, xb, cb, ob):
    """Double-buffered VMEM working set of the full-K kernel (bytes)."""
    return (2 * tm * kp * xb          # X tiles
            + 2 * kp * tn * cb        # W tiles (resident, still double-buffered)
            + 2 * 8 * tn * 4          # bias tiles (sublane-padded)
            + 2 * tm * tn * ob)       # output tiles


def _ktiled_footprint(tm, tn, tk, xb, cb, ob):
    """Double-buffered VMEM working set of the K-tiled kernel (bytes)."""
    return (2 * (tm * tk * xb + tk * tn * cb + 8 * tn * 4 + tm * tn * ob)
            + tm * tn * 4)            # f32 accumulator scratch


# ----------------------------------------------------------------------------- kernels
def _linear_fullk_kernel(x_ref, w_ref, b_ref, o_ref):
    """One (tm x tn) output tile, whole K resident: single MXU pass, no scratch."""
    acc = jnp.dot(x_ref[...].astype(w_ref.dtype), w_ref[...],
                  preferred_element_type=jnp.float32)
    o_ref[...] = (acc + b_ref[...]).astype(o_ref.dtype)


def _linear_ktiled_kernel(x_ref, w_ref, b_ref, o_ref, acc_ref):
    """One (tm x tn) output tile, accumulated in f32 over the K grid axis."""
    k = pl.program_id(2)

    @pl.when(k == 0)
    def _():
        acc_ref[...] = jnp.zeros_like(acc_ref)

    acc_ref[...] += jnp.dot(x_ref[...].astype(w_ref.dtype), w_ref[...],
                            preferred_element_type=jnp.float32)

    @pl.when(k == pl.num_programs(2) - 1)
    def _():
        o_ref[...] = (acc_ref[...] + b_ref[...]).astype(o_ref.dtype)


# ----------------------------------------------------------------------------- params
def prepare_column_parallel_params(weight, bias=None, compute_dtype=jnp.bfloat16):
    """One-time parameter prep (hoisted out of the hot path):
       * transpose torch-layout (out_features, in_features) -> (K, N),
       * cast to the MXU compute dtype,
       * zero-pad K and N up to multiples of 128,
       * bias as a zero-padded (1, Np) float32 row (zeros when bias is None)."""
    w = jnp.asarray(weight)
    out_features, in_features = w.shape
    kp = _round_up(in_features, 128)
    np_ = _round_up(out_features, 128)
    w_kn = w.T.astype(compute_dtype)
    if (kp, np_) != (in_features, out_features):
        w_kn = jnp.pad(w_kn, ((0, kp - in_features), (0, np_ - out_features)))
    if bias is None:
        # TODO(synk): bias=None is emulated with a zero bias row (extra N*4 B/call).
        b_row = jnp.zeros((1, np_), jnp.float32)
    else:
        b_row = jnp.asarray(bias).astype(jnp.float32).reshape(1, -1)
        if np_ != out_features:
            b_row = jnp.pad(b_row, ((0, 0), (0, np_ - out_features)))
    return w_kn, b_row


# ----------------------------------------------------------------------------- forward
@functools.partial(
    jax.jit, static_argnames=("out_features", "out_dtype", "compute_dtype"))
def column_parallel_linear(x, w_kn, b_row, *, out_features=None, out_dtype=None,
                           compute_dtype=jnp.bfloat16):
    """Y = x @ W + b with W the pre-transposed, pre-padded (Kp, Np) weight from
    prepare_column_parallel_params.  out_features gives the true (unpadded) N."""
    kp, np_pad = w_kn.shape
    n_out = int(out_features) if out_features is not None else int(np_pad)
    assert n_out <= np_pad
    out_dt = jnp.dtype(out_dtype) if out_dtype is not None else x.dtype

    orig_shape = x.shape
    k_in = int(orig_shape[-1])
    assert k_in <= kp
    x2d = x.reshape(-1, k_in)
    m = int(x2d.shape[0])

    cb = jnp.dtype(compute_dtype).itemsize
    ob = jnp.dtype(out_dt).itemsize

    # Cast activations outside the kernel only when they are large enough that
    # re-streaming them at full width would cost more than one extra HBM pass.
    cast_outside = (x2d.dtype != compute_dtype) and (m > 1024)
    if cast_outside:
        x2d = x2d.astype(compute_dtype)
    if k_in != kp:
        # Zero-padding along K only (required for correctness; usually a no-op).
        x2d = jnp.pad(x2d, ((0, 0), (0, kp - k_in)))
    xb = x2d.dtype.itemsize

    vmem_limit = _vmem_limit_bytes()
    tile_budget = vmem_limit - 4 * 1024 * 1024

    # --- tile selection: prefer the full-K path ------------------------------
    tm = min(512, _round_up(m, 16))          # 16: whole packed bf16 vregs
    tn = min(1024, _round_up(n_out, 128))    # lane-dense output stores
    use_fullk = False
    while True:
        if _fullk_footprint(tm, tn, kp, xb, cb, ob) <= tile_budget:
            use_fullk = True
            break
        if tn > 128:
            tn = max(128, ((tn // 2) // 128) * 128)
        elif tm > 16:
            tm = max(16, ((tm // 2) // 16) * 16)
        else:
            break

    cost = pl.CostEstimate(
        flops=2 * m * n_out * kp,
        transcendentals=0,
        bytes_accessed=(m * kp * xb + kp * np_pad * cb + np_pad * 4
                        + m * n_out * ob),
    )
    cparams_kwargs = dict(vmem_limit_bytes=vmem_limit)

    if use_fullk:
        # Megacore balance: never leave a v7x TensorCore idle on a 1x1 grid.
        if pl.cdiv(m, tm) == 1 and pl.cdiv(n_out, tn) == 1 and tn % 256 == 0:
            tn //= 2
        grid = (pl.cdiv(n_out, tn), pl.cdiv(m, tm))  # M fastest -> W/bias resident
        out2d = pl.pallas_call(
            _linear_fullk_kernel,
            out_shape=jax.ShapeDtypeStruct((m, n_out), out_dt),
            grid_spec=pltpu.PrefetchScalarGridSpec(
                num_scalar_prefetch=0,
                grid=grid,
                in_specs=[
                    pl.BlockSpec((tm, kp), lambda j, i: (i, 0)),   # X (streams over i)
                    pl.BlockSpec((kp, tn), lambda j, i: (0, j)),   # W (resident over i)
                    pl.BlockSpec((1, tn), lambda j, i: (0, j)),    # bias (resident)
                ],
                out_specs=pl.BlockSpec((tm, tn), lambda j, i: (i, j)),
            ),
            compiler_params=pltpu.CompilerParams(
                dimension_semantics=("parallel", "parallel"), **cparams_kwargs),
            cost_estimate=cost,
        )(x2d, w_kn, b_row)
    else:
        # K-tiled fallback (only for very large K).
        tm = min(512, _round_up(m, 16))
        tn = min(1024, _round_up(n_out, 128))
        tk = min(1024, kp)
        while kp % tk:
            tk -= 128
        while _ktiled_footprint(tm, tn, tk, xb, cb, ob) > tile_budget and tn > 128:
            tn = max(128, ((tn // 2) // 128) * 128)
        while _ktiled_footprint(tm, tn, tk, xb, cb, ob) > tile_budget and tm > 16:
            tm = max(16, ((tm // 2) // 16) * 16)
        grid = (pl.cdiv(m, tm), pl.cdiv(n_out, tn), kp // tk)
        out2d = pl.pallas_call(
            _linear_ktiled_kernel,
            out_shape=jax.ShapeDtypeStruct((m, n_out), out_dt),
            grid_spec=pltpu.PrefetchScalarGridSpec(
                num_scalar_prefetch=0,
                grid=grid,
                in_specs=[
                    pl.BlockSpec((tm, tk), lambda i, j, k: (i, k)),   # X tile
                    pl.BlockSpec((tk, tn), lambda i, j, k: (k, j)),   # W tile
                    pl.BlockSpec((1, tn), lambda i, j, k: (0, j)),    # bias tile
                ],
                out_specs=pl.BlockSpec((tm, tn), lambda i, j, k: (i, j)),
                scratch_shapes=[pltpu.VMEM((tm, tn), jnp.float32)],
            ),
            compiler_params=pltpu.CompilerParams(
                dimension_semantics=("parallel", "parallel", "arbitrary"),
                **cparams_kwargs),
            cost_estimate=cost,
        )(x2d, w_kn, b_row)

    return out2d.reshape(*orig_shape[:-1], n_out)


def init_column_parallel_linear(key, in_features, out_features, dtype=jnp.float32):
    """Deterministic xavier-normal weight (torch.nn.init.xavier_normal_), zero bias."""
    std = (2.0 / (in_features + out_features)) ** 0.5
    weight = std * jax.random.normal(key, (out_features, in_features), dtype=dtype)
    bias = jnp.zeros((out_features,), dtype=dtype)
    return weight, bias


if __name__ == "__main__":
    # Small shapes consistent with the module: batch=2, seq=8, hidden 256 -> 512.
    batch, seq = 2, 8
    in_features, out_features = 256, 512

    root = jax.random.PRNGKey(0)
    k_x, k_w = jax.random.split(root)

    x = jax.random.normal(k_x, (batch, seq, in_features), dtype=jnp.float32)
    weight, bias = init_column_parallel_linear(k_w, in_features, out_features)

    # One-time weight prep (pre-transposed + pre-padded (K,N) bf16, f32 bias row).
    w_kn, b_row = prepare_column_parallel_params(weight, bias)
    w_kn, b_row = jax.block_until_ready((w_kn, b_row))

    y = column_parallel_linear(x, w_kn, b_row, out_features=out_features)
    jax.block_until_ready(y)

    # Cross-check against plain-JAX f32 reference (F.linear semantics).
    y_ref = x @ weight.T + bias
    assert y.shape == (batch, seq, out_features)
    # bf16 MXU inputs with f32 accumulation: tolerance ~1e-2 relative.
    assert jnp.allclose(y.astype(jnp.float32), y_ref, atol=3e-2, rtol=3e-2)

    print("KERNEL_OK")
</pallas_src>

<mosaic_0001>
module attributes {stable_mosaic.version = 11 : i64} {
  func.func @_linear_fullk_kernel(%arg0: i32, %arg1: i32, %arg2: memref<16x256xf32, #tpu.memory_space<vmem>>, %arg3: memref<256x256xbf16, #tpu.memory_space<vmem>>, %arg4: memref<1x256xf32, #tpu.memory_space<vmem>>, %arg5: memref<16x256xf32, #tpu.memory_space<vmem>>) attributes {dimension_semantics = [#tpu.dimension_semantics<parallel>, #tpu.dimension_semantics<parallel>], iteration_bounds = array<i64: 2, 1>, scalar_prefetch = 0 : i64, scratch_operands = 0 : i64, tpu.core_type = #tpu.core_type<tc>, window_params = [{transform_indices = @transform_0, window_bounds = array<i64: 16, 256>}, {transform_indices = @transform_1, window_bounds = array<i64: 256, 256>}, {transform_indices = @transform_2, window_bounds = array<i64: 1, 256>}, {transform_indices = @transform_3, window_bounds = array<i64: 16, 256>}]} {
    %c0 = arith.constant 0 : index
    %c0_0 = arith.constant 0 : index
    %0 = vector.load %arg2[%c0, %c0_0] : memref<16x256xf32, #tpu.memory_space<vmem>>, vector<16x256xf32>
    %1 = arith.truncf %0 : vector<16x256xf32> to vector<16x256xbf16>
    %c0_1 = arith.constant 0 : index
    %c0_2 = arith.constant 0 : index
    %2 = vector.load %arg3[%c0_1, %c0_2] : memref<256x256xbf16, #tpu.memory_space<vmem>>, vector<256x256xbf16>
    %cst = arith.constant dense<0.000000e+00> : vector<16x256xf32>
    %3 = tpu.matmul %1, %2, %cst {dimension_numbers = #tpu.dot_dimension_numbers<[1], [0], [0], [1], [0, 0, 1, 1], [], []>} : vector<16x256xbf16>, vector<256x256xbf16>, vector<16x256xf32> -> vector<16x256xf32>
    %c0_3 = arith.constant 0 : index
    %c0_4 = arith.constant 0 : index
    %4 = vector.load %arg4[%c0_3, %c0_4] : memref<1x256xf32, #tpu.memory_space<vmem>>, vector<1x256xf32>
    %5 = vector.broadcast %4 : vector<1x256xf32> to vector<16x256xf32>
    %6 = arith.addf %3, %5 : vector<16x256xf32>
    %c0_5 = arith.constant 0 : index
    %c0_6 = arith.constant 0 : index
    %7 = vector.load %arg5[%c0_5, %c0_6] : memref<16x256xf32, #tpu.memory_space<vmem>>, vector<16x256xf32>
    tpu.vector_store %arg5[%c0_5, %c0_6], %6 {strides = array<i32>} : memref<16x256xf32, #tpu.memory_space<vmem>>, vector<16x256xf32>,
    return
  }
  func.func @transform_0(%arg0: i32, %arg1: i32) -> (i32, i32) {
    %c0_i32 = arith.constant 0 : i32
    %c0_i32_0 = arith.constant 0 : i32
    return %arg1, %c0_i32 : i32, i32
  }
  func.func @transform_1(%arg0: i32, %arg1: i32) -> (i32, i32) {
    %c0_i32 = arith.constant 0 : i32
    %c0_i32_0 = arith.constant 0 : i32
    return %c0_i32, %arg0 : i32, i32
  }
  func.func @transform_2(%arg0: i32, %arg1: i32) -> (i32, i32) {
    %c0_i32 = arith.constant 0 : i32
    %c0_i32_0 = arith.constant 0 : i32
    return %c0_i32, %arg0 : i32, i32
  }
  func.func @transform_3(%arg0: i32, %arg1: i32) -> (i32, i32) {
    %c0_i32 = arith.constant 0 : i32
    return %arg1, %arg0 : i32, i32
  }
}

</mosaic_0001>

<llo_original>
// kernel: column_parallel_linear.1
$region0: #{column_parallel_linear.1}
  #allocation0 [shape = 'u32[]', space=smem, size = 0x4, offset = 0x4, fixed_abs, tag = 'smem constant byte address 0x4 - core index']
  #allocation1 [shape = 'u32[144,128]{1,0:T(1,128)}', space=vmem, size = 0x12000, scoped, tag = 'internal scratch']
  %s0 = inlined_call_operand.hbm [shape: f32[16,256], index: 0, kind: input, shape index: {}]
  %s1 = inlined_call_operand.hbm [shape: bf16[256,512], index: 1, kind: input, shape index: {}]
  %s2 = inlined_call_operand.vmem [shape: f32[1,512], index: 2, kind: input, shape index: {}]
  %s3 = inlined_call_operand.hbm [shape: f32[16,512], index: 3, kind: output, shape index: {}]
  %s4 = sld [smem:[#allocation0]]
  $region53: #{column_parallel_linear.1} parent=0
    _
  %s6 = ssub.s32 1, %s4
  %s7 = scalar_select 0, %s6, %s4
  $region1: #{column_parallel_linear.1} parent=0
    #allocation2 [shape = 'u8[16384]{0}', space=vmem, size = 0x4000, scoped, tag = 'input window, operand 0, single buffered']
    #allocation3 [shape = 's32[2]{0}', space=sflag, size = 0x8, scoped, tag = 'scoped memory for column_parallel_linear.1']
    #allocation4 [shape = 's32[2]{0}', space=sflag, size = 0x8, scoped, tag = 'scoped memory for column_parallel_linear.1']
    #allocation5 [shape = 'u8[262144]{0}', space=vmem, size = 0x40000, scoped, tag = 'input window, operand 1']
    #allocation6 [shape = 's32[2]{0}', space=sflag, size = 0x8, scoped, tag = 'scoped memory for column_parallel_linear.1']
    #allocation7 [shape = 'u8[32768]{0}', space=vmem, size = 0x8000, scoped, tag = 'output window, operand 0']
    %8 = vsyncpa [#allocation3], 0
    %9 = vsyncpa [#allocation6], 0
    %s10 = scalar_lea.sflag [#allocation6], 1
    %11 = vsyncpa %s10, 0
    %12 = vsyncpa [#allocation4], 0
    %s13 = scalar_lea.sflag [#allocation4], 1
    %14 = vsyncpa %s13, 0
    loop: start=0, step=1, limit=4
    $region2: #{column_parallel_linear.1} parent=1 // loop_pre_header
      _
    $region3: #{column_parallel_linear.1} parent=1 // loop_header
      %s16 = sphi 0, %s20
      %p17 = scmp.ge.s32.totalorder %s16, 4
      %s23 = sphi 0, %s35
      %s24 = sphi 0, %s31
      %s25 = sphi 0, %s23
      %s26 = sphi 0, %s24
      %s27 = sphi 0, %s25
      %s28 = sphi 0, %s26
      %s38 = sphi 0, %s40
      %s41 = sphi 0, %s38
      %s42 = sphi 0, %s41
      %s58 = sphi 0, %s42
      %s64 = sphi 0, %s66
      %s67 = sphi 0, %s64
      %s68 = sphi 0, %s67
      %s84 = sphi 0, %s68
      %s90 = sphi 0, %s92
      %s93 = sphi 0, %s90
      %s94 = sphi 0, %s93
      %s110 = sphi 0, %s94
      %s118 = sphi 0, %s120
      %s121 = sphi 0, %s118
      %s122 = sphi 0, %s121
      %s138 = sphi 0, %s122
    $region4: #{column_parallel_linear.1} parent=1 // loop_header_branch
      %19 = sbr.rel (%p17) target = $region8
    $region5: #{column_parallel_linear.1} parent=1 // loop_body
      %s21 = ssub.s32 %s16, 1
      %s22 = ssub.s32 %s16, 2
      %s29 = sadd.s32 1, %s24
      %p30 = scmp.ge.s32.totalorder %s29, 1
      %s31 = scalar_select %p30, 0, %s29
      %s32 = sadd.s32 1, %s23
      %s33 = scalar_select %p30, %s32, %s23
      %p34 = scmp.ge.s32.totalorder %s33, 2
      %s35 = scalar_select %p34, 0, %s33
      %s36 = ssub.s32 %s24, %s31
      %p37 = scmp.eq.s32.totalorder %s36, 0
      %s39 = sadd.s32 %s38, 1
      %s40 = scalar_select %p37, %s38, %s39
      %p43 = pneg %p37
      %p44 = scmp.eq.s32.totalorder %s16, 1
      %p45 = por %p43, %p44
      %p46 = scmp.ne.s32.totalorder %s38, %s41
      %p47 = scmp.eq.s32.totalorder %s16, 0
      %p48 = por %p46, %p47
      %p49 = scmp.ne.s32.totalorder %s38, %s41
      %p50 = scmp.eq.s32.totalorder %s21, 1
      %p51 = por %p49, %p50
      %p52 = scmp.ne.s32.totalorder %s41, %s42
      %p53 = scmp.eq.s32.totalorder %s21, 0
      %p54 = por %p52, %p53
      %p55 = scmp.ne.s32.totalorder %s41, %s42
      %p56 = scmp.eq.s32.totalorder %s22, 1
      %p57 = por %p55, %p56
      %p59 = scmp.ne.s32.totalorder %s42, %s58
      %p60 = scmp.eq.s32.totalorder %s22, 0
      %p61 = por %p59, %p60
      %s62 = ssub.s32 %s23, %s35
      %p63 = scmp.eq.s32.totalorder %s62, 0
      %s65 = sadd.s32 %s64, 1
      %s66 = scalar_select %p63, %s64, %s65
      %p69 = pneg %p63
      %p70 = scmp.eq.s32.totalorder %s16, 1
      %p71 = por %p69, %p70
      %p72 = scmp.ne.s32.totalorder %s64, %s67
      %p73 = scmp.eq.s32.totalorder %s16, 0
      %p74 = por %p72, %p73
      %p75 = scmp.ne.s32.totalorder %s64, %s67
      %p76 = scmp.eq.s32.totalorder %s21, 1
      %p77 = por %p75, %p76
      %p78 = scmp.ne.s32.totalorder %s67, %s68
      %p79 = scmp.eq.s32.totalorder %s21, 0
      %p80 = por %p78, %p79
      %p81 = scmp.ne.s32.totalorder %s67, %s68
      %p82 = scmp.eq.s32.totalorder %s22, 1
      %p83 = por %p81, %p82
      %p85 = scmp.ne.s32.totalorder %s68, %s84
      %p86 = scmp.eq.s32.totalorder %s22, 0
      %p87 = por %p85, %p86
      %s88 = ssub.s32 %s23, %s35
      %p89 = scmp.eq.s32.totalorder %s88, 0
      %s91 = sadd.s32 %s90, 1
      %s92 = scalar_select %p89, %s90, %s91
      %p95 = pneg %p89
      %p96 = scmp.eq.s32.totalorder %s16, 1
      %p97 = por %p95, %p96
      %p98 = scmp.ne.s32.totalorder %s90, %s93
      %p99 = scmp.eq.s32.totalorder %s16, 0
      %p100 = por %p98, %p99
      %p101 = scmp.ne.s32.totalorder %s90, %s93
      %p102 = scmp.eq.s32.totalorder %s21, 1
      %p103 = por %p101, %p102
      %p104 = scmp.ne.s32.totalorder %s93, %s94
      %p105 = scmp.eq.s32.totalorder %s21, 0
      %p106 = por %p104, %p105
      %p107 = scmp.ne.s32.totalorder %s93, %s94
      %p108 = scmp.eq.s32.totalorder %s22, 1
      %p109 = por %p107, %p108
      %p111 = scmp.ne.s32.totalorder %s94, %s110
      %p112 = scmp.eq.s32.totalorder %s22, 0
      %p113 = por %p111, %p112
      %s114 = ssub.s32 %s24, %s31
      %s115 = ssub.s32 %s23, %s35
      %s116 = sor.u32 %s114, %s115
      %p117 = scmp.eq.s32.totalorder %s116, 0
      %s119 = sadd.s32 %s118, 1
      %s120 = scalar_select %p117, %s118, %s119
      %p123 = pneg %p117
      %p124 = scmp.eq.s32.totalorder %s16, 1
      %p125 = por %p123, %p124
      %p126 = scmp.ne.s32.totalorder %s118, %s121
      %p127 = scmp.eq.s32.totalorder %s16, 0
      %p128 = por %p126, %p127
      %p129 = scmp.ne.s32.totalorder %s118, %s121
      %p130 = scmp.eq.s32.totalorder %s21, 1
      %p131 = por %p129, %p130
      %p132 = scmp.ne.s32.totalorder %s121, %s122
      %p133 = scmp.eq.s32.totalorder %s21, 0
      %p134 = por %p132, %p133
      %p135 = scmp.ne.s32.totalorder %s121, %s122
      %p136 = scmp.eq.s32.totalorder %s22, 1
      %p137 = por %p135, %p136
      %p139 = scmp.ne.s32.totalorder %s122, %s138
      %p140 = scmp.eq.s32.totalorder %s22, 0
      %p141 = por %p139, %p140
      %p142 = scmp.le.s32.totalorder 1, %s16
      %p143 = scmp.lt.s32.totalorder %s16, 3
      %p144 = pnand %p142, %p143
      %p145 = pneg %p144
      // Predicated region
      $region9: #{column_parallel_linear.1} parent=5 // pred_check
        _
      $region10: #{column_parallel_linear.1} parent=5 // pred_check_branch
        %147 = sbr.rel (%p144) target = $region12
      $region11: #{column_parallel_linear.1} parent=5 // pred_region
        %s148 = ssub.s32 %s16, 1
        // Predicated region
        $region13: #{column_parallel_linear.1} parent=11 // pred_check
          %p149 = pneg %p54
        $region14: #{column_parallel_linear.1} parent=11 // pred_check_branch
          %151 = sbr.rel (%p149) target = $region16
        $region15: #{column_parallel_linear.1} parent=11 // pred_region
          %s152 = smul.u32 2, %s26
          %s154 = ssub.s32 512, 512
          %155 = vsyncadd [#allocation3], %s154
          %s156 = smul.addr %s152, 2
          %s157 = smul.addr %s156, 128
          %s158 = scalar_lea.hbm %s0, %s157
          %s159 = sshll.u32 [#allocation2], 4
          %s160 = int_to_ptr.vmem [resolvable:$true] %s159
          %165 = dma.hbm_to_vmem [thread:$0]  %s158, 512, %s160, [#allocation3], 256, 256, 16
        $region16: #{column_parallel_linear.1} parent=11 // pred_fallthru
          _
      $region12: #{column_parallel_linear.1} parent=5 // pred_fallthru
        _
      %p166 = scmp.lt.s32.totalorder %s16, 2
      // Predicated region
      $region17: #{column_parallel_linear.1} parent=5 // pred_check
        %p167 = pneg %p166
      $region18: #{column_parallel_linear.1} parent=5 // pred_check_branch
        %169 = sbr.rel (%p167) target = $region20
      $region19: #{column_parallel_linear.1} parent=5 // pred_region
        // Predicated region
        $region21: #{column_parallel_linear.1} parent=19 // pred_check
          %p170 = pneg %p74
        $region22: #{column_parallel_linear.1} parent=19 // pred_check_branch
          %172 = sbr.rel (%p170) target = $region24
        $region23: #{column_parallel_linear.1} parent=19 // pred_region
          %s173 = sand.u32 %s64, 1
          %s174 = scalar_lea.sflag [#allocation6], %s173
          %s175 = sand.u32 %s64, 1
          %s176 = smul.addr %s175, 256
          %s177 = scalar_lea.vmem [#allocation5], %s176
          %s178 = smul.u32 2, %s23
          %s180 = ssub.s32 4096, 4096
          %181 = vsyncadd %s174, %s180
          %s182 = smul.addr %s178, 64
          %s183 = scalar_lea.hbm %s1, %s182
          %s184 = sshll.u32 %s177, 4
          %s185 = int_to_ptr.vmem [resolvable:$true] %s184
          %190 = dma.hbm_to_vmem [thread:$0]  %s183, 4096, %s185, %s174, 256, 128, 8
        $region24: #{column_parallel_linear.1} parent=19 // pred_fallthru
          _
        // Predicated region
        $region25: #{column_parallel_linear.1} parent=19 // pred_check
          %p191 = pneg %p100
        $region26: #{column_parallel_linear.1} parent=19 // pred_check_branch
          %193 = sbr.rel (%p191) target = $region28
        $region27: #{column_parallel_linear.1} parent=19 // pred_region
          %s194 = smul.u32 2, %s23
          %p195 = scmp.lt.s32.totalorder %s194, 3
          %s196 = scalar_select %p195, %s194, 3
          %s197 = scalar_lea.vmem %s2, %s196
          %s198 = smul.u32 2, %s23
        $region28: #{column_parallel_linear.1} parent=19 // pred_fallthru
          _
      $region20: #{column_parallel_linear.1} parent=5 // pred_fallthru
        _
      %p199 = scmp.le.s32.totalorder 1, %s16
      %p200 = scmp.lt.s32.totalorder %s16, 3
      %p201 = pnand %p199, %p200
      %p202 = pneg %p201
      // Predicated region
      $region29: #{column_parallel_linear.1} parent=5 // pred_check
        _
      $region30: #{column_parallel_linear.1} parent=5 // pred_check_branch
        %204 = sbr.rel (%p201) target = $region32
      $region31: #{column_parallel_linear.1} parent=5 // pred_region
        %s205 = ssub.s32 %s16, 1
        // Predicated region
        $region33: #{column_parallel_linear.1} parent=31 // pred_check
          %p206 = pneg %p54
        $region34: #{column_parallel_linear.1} parent=31 // pred_check_branch
          %208 = sbr.rel (%p206) target = $region36
        $region35: #{column_parallel_linear.1} parent=31 // pred_region
          %209 = dma.done [#allocation3], 512
        $region36: #{column_parallel_linear.1} parent=31 // pred_fallthru
          _
        %s210 = sand.u32 %s67, 1
        %s211 = scalar_lea.sflag [#allocation6], %s210
        %s212 = sand.u32 %s67, 1
        %s213 = smul.addr %s212, 256
        %s214 = scalar_lea.vmem [#allocation5], %s213
        // Predicated region
        $region37: #{column_parallel_linear.1} parent=31 // pred_check
          %p215 = pneg %p80
        $region38: #{column_parallel_linear.1} parent=31 // pred_check_branch
          %217 = sbr.rel (%p215) target = $region40
        $region39: #{column_parallel_linear.1} parent=31 // pred_region
          %218 = dma.done %s211, 4096
        $region40: #{column_parallel_linear.1} parent=31 // pred_fallthru
          _
        %p219 = pneg %p54
        %p220 = pneg %p51
        %s221 = sand.u32 %s67, 1
        %s222 = scalar_lea.sflag [#allocation6], %s221
        %s223 = sand.u32 %s67, 1
        %s224 = smul.addr %s223, 256
        %s225 = scalar_lea.vmem [#allocation5], %s224
        %p226 = pneg %p80
        %p227 = pneg %p77
        %s228 = smul.u32 2, %s25
        %p229 = scmp.lt.s32.totalorder %s228, 3
        %s230 = scalar_select %p229, %s228, 3
        %s231 = scalar_lea.vmem %s2, %s230
        %p232 = pneg %p106
        %p233 = pneg %p103
        %p234 = pneg %p134
        %p235 = pneg %p131
        %s236 = sand.u32 %s121, 1
        %s237 = scalar_lea.sflag [#allocation4], %s236
        %s238 = sand.u32 %s121, 1
        %s239 = smul.addr %s238, 32
        %s240 = scalar_lea.vmem [#allocation7], %s239
        %s241 = smul.u32 2, %s26
        %s242 = smul.u32 2, %s25
        %s243 = smul.u32 2, %s25
        %p244 = scmp.lt.s32.totalorder %s243, 3
        %s245 = scalar_select %p244, %s243, 3
        %s246 = scalar_lea.vmem %s2, %s245
        %s247 = smul.u32 2, %s25
        %s248 = smul.u32 2, %s26
        %s249 = smul.u32 2, %s25
        %v250 = vld [vmem:[#allocation2] sm:$0xff]
        %v251 = vld [vmem:[#allocation2 + $0x8] sm:$0xff]
        %v252 = vld [vmem:[#allocation2 + $0x10] sm:$0xff]
        %v253 = vld [vmem:[#allocation2 + $0x18] sm:$0xff]
        %v254 = vpack.c.bf16 %v252, %v250
        %v255 = vpack.c.bf16 %v253, %v251
        %v256 = vld [vmem:[%s214] sm:$0xff]
        %v257 = vld [vmem:[%s214 + $0x8] sm:$0xff]
        %v258 = vld [vmem:[%s214 + $0x10] sm:$0xff]
        %v259 = vld [vmem:[%s214 + $0x18] sm:$0xff]
        %v260 = vld [vmem:[%s214 + $0x20] sm:$0xff]
        %v261 = vld [vmem:[%s214 + $0x28] sm:$0xff]
        %v262 = vld [vmem:[%s214 + $0x30] sm:$0xff]
        %v263 = vld [vmem:[%s214 + $0x38] sm:$0xff]
        %v264 = vld [vmem:[%s214 + $0x40] sm:$0xff]
        %v265 = vld [vmem:[%s214 + $0x48] sm:$0xff]
        %v266 = vld [vmem:[%s214 + $0x50] sm:$0xff]
        %v267 = vld [vmem:[%s214 + $0x58] sm:$0xff]
        %v268 = vld [vmem:[%s214 + $0x60] sm:$0xff]
        %v269 = vld [vmem:[%s214 + $0x68] sm:$0xff]
        %v270 = vld [vmem:[%s214 + $0x70] sm:$0xff]
        %v271 = vld [vmem:[%s214 + $0x78] sm:$0xff]
        %v272 = vld [vmem:[%s214 + $0x80] sm:$0xff]
        %v273 = vld [vmem:[%s214 + $0x88] sm:$0xff]
        %v274 = vld [vmem:[%s214 + $0x90] sm:$0xff]
        %v275 = vld [vmem:[%s214 + $0x98] sm:$0xff]
        %v276 = vld [vmem:[%s214 + $0xa0] sm:$0xff]
        %v277 = vld [vmem:[%s214 + $0xa8] sm:$0xff]
        %v278 = vld [vmem:[%s214 + $0xb0] sm:$0xff]
        %v279 = vld [vmem:[%s214 + $0xb8] sm:$0xff]
        %v280 = vld [vmem:[%s214 + $0xc0] sm:$0xff]
        %v281 = vld [vmem:[%s214 + $0xc8] sm:$0xff]
        %v282 = vld [vmem:[%s214 + $0xd0] sm:$0xff]
        %v283 = vld [vmem:[%s214 + $0xd8] sm:$0xff]
        %v284 = vld [vmem:[%s214 + $0xe0] sm:$0xff]
        %v285 = vld [vmem:[%s214 + $0xe8] sm:$0xff]
        %v286 = vld [vmem:[%s214 + $0xf0] sm:$0xff]
        %v287 = vld [vmem:[%s214 + $0xf8] sm:$0xff]
        %v288 = vld [vmem:[%s246] sm:$0x3]
        %v290 = vlaneseq
        %v291 = vshrl.u32 %v290, 7
        %v292 = vsub.s32 0, %v291
        %v293 = vrot.slane %v288, %v292
        %v294 = vlaneseq
        %v295 = vshrl.u32 %v294, 7
        %v296 = vsub.s32 1, %v295
        %v297 = vrot.slane %v288, %v296
        %v332 = vunpack.c.l.b16 %v256
        %v333 = vunpack.c.h.b16 %v256
        %v334 = vunpack.c.l.b16 %v257
        %v335 = vunpack.c.h.b16 %v257
        %v336 = vunpack.c.l.b16 %v258
        %v337 = vunpack.c.h.b16 %v258
        %v338 = vunpack.c.l.b16 %v259
        %v339 = vunpack.c.h.b16 %v259
        %v340 = vunpack.c.l.b16 %v260
        %v341 = vunpack.c.h.b16 %v260
        %v342 = vunpack.c.l.b16 %v261
        %v343 = vunpack.c.h.b16 %v261
        %v344 = vunpack.c.l.b16 %v262
        %v345 = vunpack.c.h.b16 %v262
        %v346 = vunpack.c.l.b16 %v263
        %v347 = vunpack.c.h.b16 %v263
        %v348 = vunpack.c.l.b16 %v264
        %v349 = vunpack.c.h.b16 %v264
        %v350 = vunpack.c.l.b16 %v265
        %v351 = vunpack.c.h.b16 %v265
        %v352 = vunpack.c.l.b16 %v266
        %v353 = vunpack.c.h.b16 %v266
        %v354 = vunpack.c.l.b16 %v267
        %v355 = vunpack.c.h.b16 %v267
        %v356 = vunpack.c.l.b16 %v268
        %v357 = vunpack.c.h.b16 %v268
        %v358 = vunpack.c.l.b16 %v269
        %v359 = vunpack.c.h.b16 %v269
        %v360 = vunpack.c.l.b16 %v270
        %v361 = vunpack.c.h.b16 %v270
        %v362 = vunpack.c.l.b16 %v271
        %v363 = vunpack.c.h.b16 %v271
        %v364 = vunpack.c.l.b16 %v272
        %v365 = vunpack.c.h.b16 %v272
        %v366 = vunpack.c.l.b16 %v273
        %v367 = vunpack.c.h.b16 %v273
        %v368 = vunpack.c.l.b16 %v274
        %v369 = vunpack.c.h.b16 %v274
        %v370 = vunpack.c.l.b16 %v275
        %v371 = vunpack.c.h.b16 %v275
        %v372 = vunpack.c.l.b16 %v276
        %v373 = vunpack.c.h.b16 %v276
        %v374 = vunpack.c.l.b16 %v277
        %v375 = vunpack.c.h.b16 %v277
        %v376 = vunpack.c.l.b16 %v278
        %v377 = vunpack.c.h.b16 %v278
        %v378 = vunpack.c.l.b16 %v279
        %v379 = vunpack.c.h.b16 %v279
        %v380 = vunpack.c.l.b16 %v280
        %v381 = vunpack.c.h.b16 %v280
        %v382 = vunpack.c.l.b16 %v281
        %v383 = vunpack.c.h.b16 %v281
        %v384 = vunpack.c.l.b16 %v282
        %v385 = vunpack.c.h.b16 %v282
        %v386 = vunpack.c.l.b16 %v283
        %v387 = vunpack.c.h.b16 %v283
        %v388 = vunpack.c.l.b16 %v284
        %v389 = vunpack.c.h.b16 %v284
        %v390 = vunpack.c.l.b16 %v285
        %v391 = vunpack.c.h.b16 %v285
        %v392 = vunpack.c.l.b16 %v286
        %v393 = vunpack.c.h.b16 %v286
        %v394 = vunpack.c.l.b16 %v287
        %v395 = vunpack.c.h.b16 %v287
        %v396 = vpack.c.b16 %v334, %v332
        %v397 = vpack.c.b16 %v335, %v333
        %v398 = vpack.c.b16 %v338, %v336
        %v399 = vpack.c.b16 %v339, %v337
        %v400 = vpack.c.b16 %v342, %v340
        %v401 = vpack.c.b16 %v343, %v341
        %v402 = vpack.c.b16 %v346, %v344
        %v403 = vpack.c.b16 %v347, %v345
        %v404 = vpack.c.b16 %v350, %v348
        %v405 = vpack.c.b16 %v351, %v349
        %v406 = vpack.c.b16 %v354, %v352
        %v407 = vpack.c.b16 %v355, %v353
        %v408 = vpack.c.b16 %v358, %v356
        %v409 = vpack.c.b16 %v359, %v357
        %v410 = vpack.c.b16 %v362, %v360
        %v411 = vpack.c.b16 %v363, %v361
        %v412 = vpack.c.b16 %v366, %v364
        %v413 = vpack.c.b16 %v367, %v365
        %v414 = vpack.c.b16 %v370, %v368
        %v415 = vpack.c.b16 %v371, %v369
        %v416 = vpack.c.b16 %v374, %v372
        %v417 = vpack.c.b16 %v375, %v373
        %v418 = vpack.c.b16 %v378, %v376
        %v419 = vpack.c.b16 %v379, %v377
        %v420 = vpack.c.b16 %v382, %v380
        %v421 = vpack.c.b16 %v383, %v381
        %v422 = vpack.c.b16 %v386, %v384
        %v423 = vpack.c.b16 %v387, %v385
        %v424 = vpack.c.b16 %v390, %v388
        %v425 = vpack.c.b16 %v391, %v389
        %v426 = vpack.c.b16 %v394, %v392
        %v427 = vpack.c.b16 %v395, %v393
        %460 = vmatprep.subr.bf16.mxu0 %v411
        %461 = vmatpush1.bf16.msra.mxu0 %v410
        %462 = vmatprep.subr.bf16.mxu0 %v409
        %463 = vmatpush1.bf16.msra.mxu0 %v408
        %464 = vmatprep.subr.bf16.mxu0 %v407
        %465 = vmatpush1.bf16.msra.mxu0 %v406
        %466 = vmatprep.subr.bf16.mxu0 %v405
        %467 = vmatpush1.bf16.msra.mxu0 %v404
        %468 = vmatprep.subr.bf16.mxu0 %v403
        %469 = vmatpush1.bf16.msra.mxu0 %v402
        %470 = vmatprep.subr.bf16.mxu0 %v401
        %471 = vmatpush1.bf16.msra.mxu0 %v400
        %472 = vmatprep.subr.bf16.mxu0 %v399
        %473 = vmatpush1.bf16.msra.mxu0 %v398
        %474 = vmatprep.subr.bf16.mxu0 %v397
        %475 = vmatpush1.bf16.msra.mxu0 %v396
        %476 = vmatprep.subr.bf16.mxu0 %v427
        %477 = vmatpush2.bf16.msra.mxu0 %v426
        %478 = vmatprep.subr.bf16.mxu0 %v425
        %479 = vmatpush2.bf16.msra.mxu0 %v424
        %480 = vmatprep.subr.bf16.mxu0 %v423
        %481 = vmatpush2.bf16.msra.mxu0 %v422
        %482 = vmatprep.subr.bf16.mxu0 %v421
        %483 = vmatpush2.bf16.msra.mxu0 %v420
        %484 = vmatprep.subr.bf16.mxu0 %v419
        %485 = vmatpush2.bf16.msra.mxu0 %v418
        %486 = vmatprep.subr.bf16.mxu0 %v417
        %487 = vmatpush2.bf16.msra.mxu0 %v416
        %488 = vmatprep.subr.bf16.mxu0 %v415
        %489 = vmatpush2.bf16.msra.mxu0 %v414
        %490 = vmatprep.subr.bf16.mxu0 %v413
        %491 = vmatpush2.bf16.msra.mxu0 %v412
        %492 = vmatprep.mubr.bf16.mxu0 %v255
        %493 = vmatmul.mubr.bf16.gmra.mxu0 %v254
        %v494 = vpop.f32.mrf.mxu0
        %v495 = vadd.f32 %v293, %v494
        %v496 = vpop.f32.mrf.mxu0
        %v497 = vadd.f32 %v297, %v496
        %v498 = vpop.f32.mrf.mxu0
        %v499 = vadd.f32 %v293, %v498
        %v500 = vpop.f32.mrf.mxu0
        %v501 = vadd.f32 %v297, %v500
        %502 = vdwg.mxu0
        %503 = vst [vmem:[%s240] sm:$0xff] %v495
        %504 = vst [vmem:[%s240 + $0x8] sm:$0xff] %v497
        %505 = vst [vmem:[%s240 + $0x10] sm:$0xff] %v499
        %506 = vst [vmem:[%s240 + $0x18] sm:$0xff] %v501
        %s507 = sand.u32 %s121, 1
        %s508 = scalar_lea.sflag [#allocation4], %s507
        %s509 = sand.u32 %s121, 1
        %s510 = smul.addr %s509, 32
        %s511 = scalar_lea.vmem [#allocation7], %s510
        // Predicated region
        $region41: #{column_parallel_linear.1} parent=31 // pred_check
          %p512 = pneg %p131
        $region42: #{column_parallel_linear.1} parent=31 // pred_check_branch
          %514 = sbr.rel (%p512) target = $region44
        $region43: #{column_parallel_linear.1} parent=31 // pred_region
          %s515 = smul.u32 2, %s26
          %s516 = smul.u32 2, %s25
          %s518 = ssub.s32 512, 512
          %519 = vsyncadd %s508, %s518
          %s520 = smul.addr %s515, 4
          %s521 = sadd.s32 %s516, %s520
          %s522 = smul.addr %s521, 128
          %s523 = scalar_lea.hbm %s3, %s522
          %s524 = sshll.u32 %s511, 4
          %s525 = int_to_ptr.vmem [resolvable:$true] %s524
          %530 = dma.vmem_to_hbm [thread:$0]  %s525, 512, %s523, %s508, 256, 512, 16
        $region44: #{column_parallel_linear.1} parent=31 // pred_fallthru
          _
      $region32: #{column_parallel_linear.1} parent=5 // pred_fallthru
        _
      %p531 = scmp.le.s32.totalorder 2, %s16
      // Predicated region
      $region45: #{column_parallel_linear.1} parent=5 // pred_check
        %p532 = pneg %p531
      $region46: #{column_parallel_linear.1} parent=5 // pred_check_branch
        %534 = sbr.rel (%p532) target = $region48
      $region47: #{column_parallel_linear.1} parent=5 // pred_region
        %s535 = ssub.s32 %s16, 2
        // Predicated region
        $region49: #{column_parallel_linear.1} parent=47 // pred_check
          %p536 = pneg %p137
        $region50: #{column_parallel_linear.1} parent=47 // pred_check_branch
          %538 = sbr.rel (%p536) target = $region52
        $region51: #{column_parallel_linear.1} parent=47 // pred_region
          %s539 = sand.u32 %s122, 1
          %s540 = scalar_lea.sflag [#allocation4], %s539
          %s541 = sand.u32 %s122, 1
          %s542 = smul.addr %s541, 32
          %s543 = scalar_lea.vmem [#allocation7], %s542
          %544 = dma.done %s540, 512
        $region52: #{column_parallel_linear.1} parent=47 // pred_fallthru
          _
      $region48: #{column_parallel_linear.1} parent=5 // pred_fallthru
        _
    $region6: #{column_parallel_linear.1} parent=1 // loop_footer
      %s20 = sadd.s32 1, %s16
    $region7: #{column_parallel_linear.1} parent=1 // loop_footer_branch
      %15 = sbr.rel target = $region3
    $region8: #{column_parallel_linear.1} parent=1 // loop_exit
      _
    %545 = vsyncpa [#allocation3], 1
    %s546 = scalar_lea.sflag [#allocation3], 1
    %547 = vsyncpa %s546, 1
    %548 = vsyncpa [#allocation6], 1
    %s549 = scalar_lea.sflag [#allocation6], 1
    %550 = vsyncpa %s549, 1
    %551 = vsyncpa [#allocation4], 1
    %s552 = scalar_lea.sflag [#allocation4], 1
    %553 = vsyncpa %s552, 1

</llo_original>
